<compile_context>
chip_gen: v7x
topology: tpu7x:2x2x1
jax: 0.10.0
libtpu: 0.0.40
codegen_flags: <defaults>
</compile_context>

<pallas_src>
import functools

import jax
import jax.numpy as jnp
from jax.experimental import pallas as pl
from jax.experimental.pallas import tpu as pltpu


def _round_up(x, m):
    return (x + m - 1) // m * m


def _encoder_kernel(x_ref, w1_ref, b1_ref, w2_ref, b2_ref,
                    o_ref, ps_ref, *, n_valid_rows, tm):
    """One row-tile: logits = relu(x@W1+b1)@W2+b2, plus sum(logits**2) partials.

    x_ref : (tm, F)  f32    streamed / double-buffered per grid step
    w1_ref: (F, H)   bf16   resident across grid steps
    b1_ref: (1, H)   f32
    w2_ref: (H, V)   bf16   resident
    b2_ref: (1, V)   f32
    o_ref : (tm, V)  bf16   logits tile (bf16 writeback: half the HBM bytes)
    ps_ref: (8, V)   f32    per-sublane/lane partial sums of logits**2
    """
    vocab = o_ref.shape[-1]

    # Layer 1: cast x to bf16 in-kernel (VPU), bf16 MXU matmul, f32 accumulate;
    # bias + ReLU epilogue stays in f32 (v5e-safe).
    h = jnp.dot(x_ref[...].astype(jnp.bfloat16), w1_ref[...],
                preferred_element_type=jnp.float32)
    h = jnp.maximum(h + b1_ref[...], 0.0)

    # Layer 2: re-cast activations to bf16 for the MXU, accumulate in f32.
    logits = jnp.dot(h.astype(jnp.bfloat16), w2_ref[...],
                     preferred_element_type=jnp.float32)
    logits = logits + b2_ref[...]
    o_ref[...] = logits.astype(o_ref.dtype)          # bf16 writeback

    # Fused loss partials from the f32 accumulator: reduce the (tm, V) tile to
    # an (8, V) block of partial sums; tiny final reduction happens outside.
    sq = logits * logits
    ragged = (n_valid_rows % tm) != 0                # static (trace-time) fact

    if not ragged:
        # Every tile is full of valid rows — no mask needed anywhere.
        ps_ref[...] = jnp.sum(sq.reshape(tm // 8, 8, vocab), axis=0)
    else:
        i = pl.program_id(0)
        last = pl.num_programs(0) - 1

        @pl.when(i != last)
        def _():
            ps_ref[...] = jnp.sum(sq.reshape(tm // 8, 8, vocab), axis=0)

        @pl.when(i == last)
        def _():
            # Only the clipped last tile can contain invalid (OOB) rows.
            row_ids = i * tm + jax.lax.broadcasted_iota(jnp.int32, (tm, 1), 0)
            sq_m = jnp.where(row_ids < n_valid_rows, sq, 0.0)
            ps_ref[...] = jnp.sum(sq_m.reshape(tm // 8, 8, vocab), axis=0)


def _pick_row_tile(rows):
    """Row-tile size (multiple of 8) and number of grid steps."""
    rows8 = _round_up(rows, 8)
    if rows8 <= 512:
        tm = rows8                       # one tile; per-step overhead is moot
    else:
        # Large inputs: ~1K-row tiles sit on the HBM-roofline plateau; split
        # into >= 2 tiles so the "parallel" row axis feeds both v7x TCs.
        tm = min(1024, _round_up((rows8 + 1) // 2, 8))
    return tm, pl.cdiv(rows, tm)


def _encoder_pallas(x2d_f32, w1, b1, w2, b2, *, n_valid_rows, tm, num_tiles):
    rows, feat = x2d_f32.shape
    hid = w1.shape[1]
    vocab = w2.shape[1]

    kernel = functools.partial(_encoder_kernel, n_valid_rows=n_valid_rows, tm=tm)

    flops = 2 * rows * feat * hid + 2 * rows * hid * vocab
    bytes_accessed = (rows * feat * 4            # x (f32 read)
                      + rows * vocab * 2         # logits (bf16 write)
                      + num_tiles * 8 * vocab * 4
                      + feat * hid * 2 + hid * 4
                      + hid * vocab * 2 + vocab * 4)

    return pl.pallas_call(
        kernel,
        out_shape=(
            jax.ShapeDtypeStruct((rows, vocab), jnp.bfloat16),          # logits
            jax.ShapeDtypeStruct((num_tiles * 8, vocab), jnp.float32),  # loss partials
        ),
        grid_spec=pl.GridSpec(
            grid=(num_tiles,),
            in_specs=[
                pl.BlockSpec((tm, feat), lambda i: (i, 0)),     # x: row-tiled f32
                pl.BlockSpec((feat, hid), lambda i: (0, 0)),    # W1: resident
                pl.BlockSpec((1, hid), lambda i: (0, 0)),       # b1: resident
                pl.BlockSpec((hid, vocab), lambda i: (0, 0)),   # W2: resident
                pl.BlockSpec((1, vocab), lambda i: (0, 0)),     # b2: resident
            ],
            out_specs=[
                pl.BlockSpec((tm, vocab), lambda i: (i, 0)),
                pl.BlockSpec((8, vocab), lambda i: (i, 0)),
            ],
        ),
        compiler_params=pltpu.CompilerParams(
            # No cross-step carry (weights constant, outputs per-tile), so the
            # row axis is legitimately parallel -> megacore sharding on v7x.
            dimension_semantics=("parallel",),
        ),
        cost_estimate=pl.CostEstimate(
            flops=flops, transcendentals=0, bytes_accessed=bytes_accessed),
    )(x2d_f32, w1, b1, w2, b2)


@jax.jit
def _encoder_forward(x, w1, b1, w2, b2):
    """[B, T, F] -> (scalar mean(logits**2) loss, [B, T, V] bf16 logits)."""
    B, T, F = x.shape
    rows = B * T
    vocab = w2.shape[1]

    # Contiguous reshape is a bitcast (no copy); no pad, no standalone cast.
    x2d = x.reshape(rows, F)

    tm, num_tiles = _pick_row_tile(rows)

    logits2d, partials = _encoder_pallas(
        x2d, w1, b1, w2, b2, n_valid_rows=rows, tm=tm, num_tiles=num_tiles)

    logits = logits2d.reshape(B, T, vocab)
    loss = jnp.sum(partials) / (rows * vocab)
    return loss, logits


class SyntheticASRModule:
    """Stand-in for the wrapped ASR model. Parameters built deterministically.

    Dims default to 128 so feature/hidden/vocab axes are lane-dense on TPU.
    Matmul operands live in bf16 (MXU fast path); biases/epilogue stay f32.
    """

    def __init__(self, feat_dim=128, hidden_dim=128, vocab=128, key=None):
        key = jax.random.PRNGKey(0) if key is None else key
        k1, k2, k3, k4 = jax.random.split(key, 4)
        scale1 = 1.0 / jnp.sqrt(feat_dim)
        scale2 = 1.0 / jnp.sqrt(hidden_dim)
        self.w1 = (jax.random.normal(k1, (feat_dim, hidden_dim), jnp.float32)
                   * scale1).astype(jnp.bfloat16)
        self.b1 = jax.random.normal(k2, (1, hidden_dim), jnp.float32) * 0.01
        self.w2 = (jax.random.normal(k3, (hidden_dim, vocab), jnp.float32)
                   * scale2).astype(jnp.bfloat16)
        self.b2 = jax.random.normal(k4, (1, vocab), jnp.float32) * 0.01

    def __call__(self, batch, task, is_eval=False, teacher=None, teacher_lm=None):
        x = batch["xs"]                                   # [B, T, F]
        loss, logits = _encoder_forward(x, self.w1, self.b1, self.w2, self.b2)
        observation = {"loss": loss, "task": task, "is_eval": is_eval}
        return loss, observation, logits


class CPUWrapperASR:
    """JAX equivalent of neural_sp CPUWrapperASR: pure delegation wrapper."""

    def __init__(self, model):
        self.module = model

    def forward(self, batch, task, is_eval=False, teacher=None, teacher_lm=None):
        return self.module(batch, task, is_eval, teacher, teacher_lm)

    __call__ = forward


if __name__ == "__main__":
    key = jax.random.PRNGKey(0)
    kx, kparams = jax.random.split(key)

    B, T = 2, 8                    # batch=2, seq=8  -> rows = 16
    F = H = V = 128                # lane-dense TPU-friendly dims

    xs = jax.random.normal(kx, (B, T, F), jnp.float32)
    batch = {"xs": xs}

    model = SyntheticASRModule(feat_dim=F, hidden_dim=H, vocab=V, key=kparams)
    wrapper = CPUWrapperASR(model)

    loss, observation, logits = wrapper(batch, task="ys", is_eval=False)
    jax.block_until_ready(loss)
    jax.block_until_ready(logits)

    # Reference mirrors the kernel numerics: bf16 operands, f32 accumulation,
    # f32 bias/ReLU epilogue, h re-cast to bf16 before the second matmul.
    # Kernel logits are bf16 (writeback), so compare with bf16 tolerances;
    # the loss is computed from the f32 accumulator, so it stays tight.
    hp = jax.lax.Precision.HIGHEST
    x2r = xs.reshape(B * T, F).astype(jnp.bfloat16).astype(jnp.float32)
    w1r = model.w1.astype(jnp.float32)
    w2r = model.w2.astype(jnp.float32)
    h_ref = jnp.maximum(jnp.dot(x2r, w1r, precision=hp) + model.b1, 0.0)
    h_ref = h_ref.astype(jnp.bfloat16).astype(jnp.float32)
    ref = jnp.dot(h_ref, w2r, precision=hp) + model.b2
    ref_loss = jnp.mean(ref ** 2)

    out = logits.reshape(B * T, V).astype(jnp.float32)
    assert jnp.allclose(out, ref, atol=2e-2, rtol=2e-2)
    assert jnp.allclose(loss, ref_loss, atol=1e-4, rtol=1e-3)

    print("KERNEL_OK")
</pallas_src>

<mosaic_0001>
module attributes {stable_mosaic.version = 11 : i64} {
  func.func @_encoder_kernel(%arg0: i32, %arg1: memref<16x128xf32, #tpu.memory_space<vmem>>, %arg2: memref<128x128xbf16, #tpu.memory_space<vmem>>, %arg3: memref<1x128xf32, #tpu.memory_space<vmem>>, %arg4: memref<128x128xbf16, #tpu.memory_space<vmem>>, %arg5: memref<1x128xf32, #tpu.memory_space<vmem>>, %arg6: memref<16x128xbf16, #tpu.memory_space<vmem>>, %arg7: memref<8x128xf32, #tpu.memory_space<vmem>>) attributes {dimension_semantics = [#tpu.dimension_semantics<parallel>], iteration_bounds = array<i64: 1>, scalar_prefetch = 0 : i64, scratch_operands = 0 : i64, tpu.core_type = #tpu.core_type<tc>, window_params = [{transform_indices = @transform_0, window_bounds = array<i64: 16, 128>}, {pipeline_mode = #tpu.pipeline_mode<synchronous>, transform_indices = @transform_1, window_bounds = array<i64: 128, 128>}, {pipeline_mode = #tpu.pipeline_mode<synchronous>, transform_indices = @transform_2, window_bounds = array<i64: 1, 128>}, {pipeline_mode = #tpu.pipeline_mode<synchronous>, transform_indices = @transform_3, window_bounds = array<i64: 128, 128>}, {pipeline_mode = #tpu.pipeline_mode<synchronous>, transform_indices = @transform_4, window_bounds = array<i64: 1, 128>}, {transform_indices = @transform_5, window_bounds = array<i64: 16, 128>}, {transform_indices = @transform_6, window_bounds = array<i64: 8, 128>}]} {
    %c0 = arith.constant 0 : index
    %c0_0 = arith.constant 0 : index
    %0 = vector.load %arg1[%c0, %c0_0] : memref<16x128xf32, #tpu.memory_space<vmem>>, vector<16x128xf32>
    %1 = arith.truncf %0 : vector<16x128xf32> to vector<16x128xbf16>
    %c0_1 = arith.constant 0 : index
    %c0_2 = arith.constant 0 : index
    %2 = vector.load %arg2[%c0_1, %c0_2] : memref<128x128xbf16, #tpu.memory_space<vmem>>, vector<128x128xbf16>
    %cst = arith.constant dense<0.000000e+00> : vector<16x128xf32>
    %3 = tpu.matmul %1, %2, %cst {dimension_numbers = #tpu.dot_dimension_numbers<[1], [0], [0], [1], [0, 0, 1, 1], [], []>} : vector<16x128xbf16>, vector<128x128xbf16>, vector<16x128xf32> -> vector<16x128xf32>
    %c0_3 = arith.constant 0 : index
    %c0_4 = arith.constant 0 : index
    %4 = vector.load %arg3[%c0_3, %c0_4] : memref<1x128xf32, #tpu.memory_space<vmem>>, vector<1x128xf32>
    %5 = vector.broadcast %4 : vector<1x128xf32> to vector<16x128xf32>
    %6 = arith.addf %3, %5 : vector<16x128xf32>
    %cst_5 = arith.constant 0.000000e+00 : f32
    %7 = vector.broadcast %cst_5 : f32 to vector<16x128xf32>
    %8 = arith.maximumf %6, %7 : vector<16x128xf32>
    %9 = arith.truncf %8 : vector<16x128xf32> to vector<16x128xbf16>
    %c0_6 = arith.constant 0 : index
    %c0_7 = arith.constant 0 : index
    %10 = vector.load %arg4[%c0_6, %c0_7] : memref<128x128xbf16, #tpu.memory_space<vmem>>, vector<128x128xbf16>
    %cst_8 = arith.constant dense<0.000000e+00> : vector<16x128xf32>
    %11 = tpu.matmul %9, %10, %cst_8 {dimension_numbers = #tpu.dot_dimension_numbers<[1], [0], [0], [1], [0, 0, 1, 1], [], []>} : vector<16x128xbf16>, vector<128x128xbf16>, vector<16x128xf32> -> vector<16x128xf32>
    %c0_9 = arith.constant 0 : index
    %c0_10 = arith.constant 0 : index
    %12 = vector.load %arg5[%c0_9, %c0_10] : memref<1x128xf32, #tpu.memory_space<vmem>>, vector<1x128xf32>
    %13 = vector.broadcast %12 : vector<1x128xf32> to vector<16x128xf32>
    %14 = arith.addf %11, %13 : vector<16x128xf32>
    %15 = arith.truncf %14 : vector<16x128xf32> to vector<16x128xbf16>
    %c0_11 = arith.constant 0 : index
    %c0_12 = arith.constant 0 : index
    %16 = vector.load %arg6[%c0_11, %c0_12] : memref<16x128xbf16, #tpu.memory_space<vmem>>, vector<16x128xbf16>
    tpu.vector_store %arg6[%c0_11, %c0_12], %15 {strides = array<i32>} : memref<16x128xbf16, #tpu.memory_space<vmem>>, vector<16x128xbf16>,
    %17 = arith.mulf %14, %14 : vector<16x128xf32>
    %18 = vector.shape_cast %17 : vector<16x128xf32> to vector<2x8x128xf32>
    %cst_13 = arith.constant dense<0.000000e+00> : vector<8x128xf32>
    %19 = vector.multi_reduction <add>, %18, %cst_13 [0] : vector<2x8x128xf32> to vector<8x128xf32>
    %c0_14 = arith.constant 0 : index
    %c0_15 = arith.constant 0 : index
    %20 = vector.load %arg7[%c0_14, %c0_15] : memref<8x128xf32, #tpu.memory_space<vmem>>, vector<8x128xf32>
    tpu.vector_store %arg7[%c0_14, %c0_15], %19 {strides = array<i32>} : memref<8x128xf32, #tpu.memory_space<vmem>>, vector<8x128xf32>,
    return
  }
  func.func @transform_0(%arg0: i32) -> (i32, i32) {
    %c0_i32 = arith.constant 0 : i32
    %c0_i32_0 = arith.constant 0 : i32
    return %arg0, %c0_i32 : i32, i32
  }
  func.func @transform_1(%arg0: i32) -> (i32, i32) {
    %c0_i32 = arith.constant 0 : i32
    %c0_i32_0 = arith.constant 0 : i32
    %c0_i32_1 = arith.constant 0 : i32
    return %c0_i32, %c0_i32_0 : i32, i32
  }
  func.func @transform_2(%arg0: i32) -> (i32, i32) {
    %c0_i32 = arith.constant 0 : i32
    %c0_i32_0 = arith.constant 0 : i32
    %c0_i32_1 = arith.constant 0 : i32
    return %c0_i32, %c0_i32_0 : i32, i32
  }
  func.func @transform_3(%arg0: i32) -> (i32, i32) {
    %c0_i32 = arith.constant 0 : i32
    %c0_i32_0 = arith.constant 0 : i32
    %c0_i32_1 = arith.constant 0 : i32
    return %c0_i32, %c0_i32_0 : i32, i32
  }
  func.func @transform_4(%arg0: i32) -> (i32, i32) {
    %c0_i32 = arith.constant 0 : i32
    %c0_i32_0 = arith.constant 0 : i32
    %c0_i32_1 = arith.constant 0 : i32
    return %c0_i32, %c0_i32_0 : i32, i32
  }
  func.func @transform_5(%arg0: i32) -> (i32, i32) {
    %c0_i32 = arith.constant 0 : i32
    %c0_i32_0 = arith.constant 0 : i32
    return %arg0, %c0_i32 : i32, i32
  }
  func.func @transform_6(%arg0: i32) -> (i32, i32) {
    %c0_i32 = arith.constant 0 : i32
    %c0_i32_0 = arith.constant 0 : i32
    return %arg0, %c0_i32 : i32, i32
  }
}

</mosaic_0001>

<llo_original>
// kernel: _encoder_forward.1
$region0: #{_encoder_forward.1}
  #allocation0 [shape = 'u32[]', space=smem, size = 0x4, offset = 0x4, fixed_abs, tag = 'smem constant byte address 0x4 - core index']
  #allocation1 [shape = 'u32[144,128]{1,0:T(1,128)}', space=vmem, size = 0x12000, scoped, tag = 'internal scratch']
  %s0 = inlined_call_operand.hbm [shape: f32[16,128], index: 0, kind: input, shape index: {}]
  %s1 = inlined_call_operand.hbm [shape: bf16[128,128], index: 1, kind: input, shape index: {}]
  %s2 = inlined_call_operand.vmem [shape: f32[1,128], index: 2, kind: input, shape index: {}]
  %s3 = inlined_call_operand.hbm [shape: bf16[128,128], index: 3, kind: input, shape index: {}]
  %s4 = inlined_call_operand.vmem [shape: f32[1,128], index: 4, kind: input, shape index: {}]
  %s5 = inlined_call_operand.hbm [shape: bf16[16,128], index: 5, kind: output, shape index: {0}]
  %s6 = inlined_call_operand.vmem [shape: f32[8,128], index: 6, kind: output, shape index: {1}]
  %7 = xla_tuple %s5, %s6
  %s8 = sld [smem:[#allocation0]]
  $region50: #{_encoder_forward.1} parent=0
    _
  %s10 = ssub.s32 1, %s8
  %s11 = scalar_select 0, %s10, %s8
  $region1: #{_encoder_forward.1} parent=0
    #allocation2 [shape = 'u8[8192]{0}', space=vmem, size = 0x2000, scoped, tag = 'input window, operand 0, single buffered']
    #allocation3 [shape = 's32[1]{0}', space=sflag, size = 0x4, scoped, tag = 'scoped memory for _encoder_forward.1']
    #allocation4 [shape = 's32[1]{0}', space=sflag, size = 0x4, scoped, tag = 'scoped memory for _encoder_forward.1']
    #allocation5 [shape = 'u8[32768]{0}', space=vmem, size = 0x8000, scoped, tag = 'input window, operand 1, single buffered']
    #allocation6 [shape = 's32[1]{0}', space=sflag, size = 0x4, scoped, tag = 'scoped memory for _encoder_forward.1']
    #allocation7 [shape = 'u8[32768]{0}', space=vmem, size = 0x8000, scoped, tag = 'input window, operand 3, single buffered']
    #allocation8 [shape = 'u8[4096]{0}', space=vmem, size = 0x1000, scoped, tag = 'output window, operand 0, single buffered']
    %12 = vsyncpa [#allocation3], 0
    %13 = vsyncpa [#allocation6], 0
    %14 = vsyncpa [#allocation4], 0
    // Predicated region
    $region2: #{_encoder_forward.1} parent=1 // pred_check
      _
    $region3: #{_encoder_forward.1} parent=1 // pred_check_branch
      %16 = sbr.rel (0) target = $region5
    $region4: #{_encoder_forward.1} parent=1 // pred_region
      %s18 = ssub.s32 256, 256
      %19 = vsyncadd [#allocation3], %s18
      %s20 = sshll.u32 [#allocation2], 4
      %s21 = int_to_ptr.vmem [resolvable:$true] %s20
      %26 = dma.hbm_to_vmem [thread:$0]  %s0, 256, %s21, [#allocation3], 128, 128, 8
    $region5: #{_encoder_forward.1} parent=1 // pred_fallthru
      _
    // Predicated region
    $region6: #{_encoder_forward.1} parent=1 // pred_check
      _
    $region7: #{_encoder_forward.1} parent=1 // pred_check_branch
      %28 = sbr.rel (0) target = $region9
    $region8: #{_encoder_forward.1} parent=1 // pred_region
      %s30 = ssub.s32 1024, 1024
      %31 = vsyncadd [#allocation6], %s30
      %s32 = sshll.u32 [#allocation5], 4
      %s33 = int_to_ptr.vmem [resolvable:$true] %s32
      %38 = dma.hbm_to_vmem [thread:$0]  %s1, 1024, %s33, [#allocation6], 64, 64, 4
    $region9: #{_encoder_forward.1} parent=1 // pred_fallthru
      _
    // Predicated region
    $region10: #{_encoder_forward.1} parent=1 // pred_check
      _
    $region11: #{_encoder_forward.1} parent=1 // pred_check_branch
      %40 = sbr.rel (0) target = $region13
    $region12: #{_encoder_forward.1} parent=1 // pred_region
      _
    $region13: #{_encoder_forward.1} parent=1 // pred_fallthru
      _
    // Predicated region
    $region14: #{_encoder_forward.1} parent=1 // pred_check
      _
    $region15: #{_encoder_forward.1} parent=1 // pred_check_branch
      %42 = sbr.rel (0) target = $region17
    $region16: #{_encoder_forward.1} parent=1 // pred_region
      %s44 = ssub.s32 1024, 1024
      %45 = vsyncadd [#allocation6], %s44
      %s46 = sshll.u32 [#allocation7], 4
      %s47 = int_to_ptr.vmem [resolvable:$true] %s46
      %52 = dma.hbm_to_vmem [thread:$0]  %s3, 1024, %s47, [#allocation6], 64, 64, 4
    $region17: #{_encoder_forward.1} parent=1 // pred_fallthru
      _
    // Predicated region
    $region18: #{_encoder_forward.1} parent=1 // pred_check
      _
    $region19: #{_encoder_forward.1} parent=1 // pred_check_branch
      %54 = sbr.rel (0) target = $region21
    $region20: #{_encoder_forward.1} parent=1 // pred_region
      _
    $region21: #{_encoder_forward.1} parent=1 // pred_fallthru
      _
    // Predicated region
    $region22: #{_encoder_forward.1} parent=1 // pred_check
      _
    $region23: #{_encoder_forward.1} parent=1 // pred_check_branch
      %56 = sbr.rel (0) target = $region25
    $region24: #{_encoder_forward.1} parent=1 // pred_region
      %57 = dma.done [#allocation3], 256
    $region25: #{_encoder_forward.1} parent=1 // pred_fallthru
      _
    // Predicated region
    $region26: #{_encoder_forward.1} parent=1 // pred_check
      _
    $region27: #{_encoder_forward.1} parent=1 // pred_check_branch
      %59 = sbr.rel (0) target = $region29
    $region28: #{_encoder_forward.1} parent=1 // pred_region
      %60 = dma.done [#allocation6], 1024
    $region29: #{_encoder_forward.1} parent=1 // pred_fallthru
      _
    // Predicated region
    $region30: #{_encoder_forward.1} parent=1 // pred_check
      _
    $region31: #{_encoder_forward.1} parent=1 // pred_check_branch
      %62 = sbr.rel (0) target = $region33
    $region32: #{_encoder_forward.1} parent=1 // pred_region
      %63 = dma.done [#allocation6], 1024
    $region33: #{_encoder_forward.1} parent=1 // pred_fallthru
      _
    %v65 = vld [vmem:[#allocation2] sm:$0xff]
    %v66 = vld [vmem:[#allocation2 + $0x8] sm:$0xff]
    %v67 = vpack.c.bf16 %v66, %v65
    %v68 = vld [vmem:[#allocation5] sm:$0xf]
    %v69 = vld [vmem:[#allocation5 + $0x4] sm:$0xf]
    %v70 = vld [vmem:[#allocation5 + $0x8] sm:$0xf]
    %v71 = vld [vmem:[#allocation5 + $0xc] sm:$0xf]
    %v72 = vld [vmem:[#allocation5 + $0x10] sm:$0xf]
    %v73 = vld [vmem:[#allocation5 + $0x14] sm:$0xf]
    %v74 = vld [vmem:[#allocation5 + $0x18] sm:$0xf]
    %v75 = vld [vmem:[#allocation5 + $0x1c] sm:$0xf]
    %v76 = vld [vmem:[#allocation5 + $0x20] sm:$0xf]
    %v77 = vld [vmem:[#allocation5 + $0x24] sm:$0xf]
    %v78 = vld [vmem:[#allocation5 + $0x28] sm:$0xf]
    %v79 = vld [vmem:[#allocation5 + $0x2c] sm:$0xf]
    %v80 = vld [vmem:[#allocation5 + $0x30] sm:$0xf]
    %v81 = vld [vmem:[#allocation5 + $0x34] sm:$0xf]
    %v82 = vld [vmem:[#allocation5 + $0x38] sm:$0xf]
    %v83 = vld [vmem:[#allocation5 + $0x3c] sm:$0xf]
    %v84 = vld [vmem:[%s2] sm:$0x1]
    %v86 = vlaneseq
    %v87 = vshrl.u32 %v86, 7
    %v88 = vsub.s32 0, %v87
    %v89 = vrot.slane %v84, %v88
    %v107 = vunpack.c.l.b16 %v68
    %v108 = vunpack.c.l.b16 %v69
    %v109 = vunpack.c.l.b16 %v70
    %v110 = vunpack.c.l.b16 %v71
    %v111 = vunpack.c.l.b16 %v72
    %v112 = vunpack.c.l.b16 %v73
    %v113 = vunpack.c.l.b16 %v74
    %v114 = vunpack.c.l.b16 %v75
    %v115 = vunpack.c.l.b16 %v76
    %v116 = vunpack.c.l.b16 %v77
    %v117 = vunpack.c.l.b16 %v78
    %v118 = vunpack.c.l.b16 %v79
    %v119 = vunpack.c.l.b16 %v80
    %v120 = vunpack.c.l.b16 %v81
    %v121 = vunpack.c.l.b16 %v82
    %v122 = vunpack.c.l.b16 %v83
    %v123 = vpack.c.b16 %v108, %v107
    %v124 = vpack.c.b16 %v110, %v109
    %v125 = vpack.c.b16 %v112, %v111
    %v126 = vpack.c.b16 %v114, %v113
    %v127 = vpack.c.b16 %v116, %v115
    %v128 = vpack.c.b16 %v118, %v117
    %v129 = vpack.c.b16 %v120, %v119
    %v130 = vpack.c.b16 %v122, %v121
    %139 = vmatprep.subr.bf16.mxu0 0
    %140 = vmatpush1.bf16.msra.mxu0 %v123
    %141 = vmatprep.subr.bf16.mxu0 0
    %142 = vmatpush1.bf16.msra.mxu0 %v124
    %143 = vmatprep.subr.bf16.mxu0 0
    %144 = vmatpush1.bf16.msra.mxu0 %v125
    %145 = vmatprep.subr.bf16.mxu0 0
    %146 = vmatpush1.bf16.msra.mxu0 %v126
    %147 = vmatprep.subr.bf16.mxu0 0
    %148 = vmatpush1.bf16.msra.mxu0 %v127
    %149 = vmatprep.subr.bf16.mxu0 0
    %150 = vmatpush1.bf16.msra.mxu0 %v128
    %151 = vmatprep.subr.bf16.mxu0 0
    %152 = vmatpush1.bf16.msra.mxu0 %v129
    %153 = vmatprep.subr.bf16.mxu0 0
    %154 = vmatpush1.bf16.msra.mxu0 %v130
    %155 = vmatprep.subr.bf16.mxu0 0
    %156 = vmatpush1.bf16.msra.mxu0 0
    %157 = vmatprep.subr.bf16.mxu0 0
    %158 = vmatpush1.bf16.msra.mxu0 0
    %159 = vmatprep.subr.bf16.mxu0 0
    %160 = vmatpush1.bf16.msra.mxu0 0
    %161 = vmatprep.subr.bf16.mxu0 0
    %162 = vmatpush1.bf16.msra.mxu0 0
    %163 = vmatprep.subr.bf16.mxu0 0
    %164 = vmatpush1.bf16.msra.mxu0 0
    %165 = vmatprep.subr.bf16.mxu0 0
    %166 = vmatpush1.bf16.msra.mxu0 0
    %167 = vmatprep.subr.bf16.mxu0 0
    %168 = vmatpush1.bf16.msra.mxu0 0
    %169 = vmatprep.subr.bf16.mxu0 0
    %170 = vmatpush1.bf16.msra.mxu0 0
    %171 = vmatprep.mubr.bf16.mxu0 0
    %172 = vmatmul.mubr.bf16.gmra.mrb[0].mxu0 %v67
    %v173 = vpop.f32.mrb[0].mxu0
    %v174 = vadd.f32 %v89, %v173
    %v175 = vpop.f32.mrb[0].mxu0
    %v176 = vpop.f32.mrb[0].mxu0
    %v177 = vadd.f32 %v89, %v176
    %v178 = vpop.f32.mrb[0].mxu0
    %179 = vdwg.mxu0
    %v180 = vmax.f32 %v174, 0.0
    %v181 = vmax.f32 %v177, 0.0
    %v182 = vpack.c.bf16 %v181, %v180
    %v183 = vld [vmem:[#allocation7] sm:$0xf]
    %v184 = vld [vmem:[#allocation7 + $0x4] sm:$0xf]
    %v185 = vld [vmem:[#allocation7 + $0x8] sm:$0xf]
    %v186 = vld [vmem:[#allocation7 + $0xc] sm:$0xf]
    %v187 = vld [vmem:[#allocation7 + $0x10] sm:$0xf]
    %v188 = vld [vmem:[#allocation7 + $0x14] sm:$0xf]
    %v189 = vld [vmem:[#allocation7 + $0x18] sm:$0xf]
    %v190 = vld [vmem:[#allocation7 + $0x1c] sm:$0xf]
    %v191 = vld [vmem:[#allocation7 + $0x20] sm:$0xf]
    %v192 = vld [vmem:[#allocation7 + $0x24] sm:$0xf]
    %v193 = vld [vmem:[#allocation7 + $0x28] sm:$0xf]
    %v194 = vld [vmem:[#allocation7 + $0x2c] sm:$0xf]
    %v195 = vld [vmem:[#allocation7 + $0x30] sm:$0xf]
    %v196 = vld [vmem:[#allocation7 + $0x34] sm:$0xf]
    %v197 = vld [vmem:[#allocation7 + $0x38] sm:$0xf]
    %v198 = vld [vmem:[#allocation7 + $0x3c] sm:$0xf]
    %v199 = vld [vmem:[%s4] sm:$0x1]
    %v201 = vlaneseq
    %v202 = vshrl.u32 %v201, 7
    %v203 = vsub.s32 0, %v202
    %v204 = vrot.slane %v199, %v203
    %v222 = vunpack.c.l.b16 %v183
    %v223 = vunpack.c.l.b16 %v184
    %v224 = vunpack.c.l.b16 %v185
    %v225 = vunpack.c.l.b16 %v186
    %v226 = vunpack.c.l.b16 %v187
    %v227 = vunpack.c.l.b16 %v188
    %v228 = vunpack.c.l.b16 %v189
    %v229 = vunpack.c.l.b16 %v190
    %v230 = vunpack.c.l.b16 %v191
    %v231 = vunpack.c.l.b16 %v192
    %v232 = vunpack.c.l.b16 %v193
    %v233 = vunpack.c.l.b16 %v194
    %v234 = vunpack.c.l.b16 %v195
    %v235 = vunpack.c.l.b16 %v196
    %v236 = vunpack.c.l.b16 %v197
    %v237 = vunpack.c.l.b16 %v198
    %v238 = vpack.c.b16 %v223, %v222
    %v239 = vpack.c.b16 %v225, %v224
    %v240 = vpack.c.b16 %v227, %v226
    %v241 = vpack.c.b16 %v229, %v228
    %v242 = vpack.c.b16 %v231, %v230
    %v243 = vpack.c.b16 %v233, %v232
    %v244 = vpack.c.b16 %v235, %v234
    %v245 = vpack.c.b16 %v237, %v236
    %254 = vmatprep.subr.bf16.mxu0 0
    %255 = vmatpush1.bf16.msra.mxu0 %v238
    %256 = vmatprep.subr.bf16.mxu0 0
    %257 = vmatpush1.bf16.msra.mxu0 %v239
    %258 = vmatprep.subr.bf16.mxu0 0
    %259 = vmatpush1.bf16.msra.mxu0 %v240
    %260 = vmatprep.subr.bf16.mxu0 0
    %261 = vmatpush1.bf16.msra.mxu0 %v241
    %262 = vmatprep.subr.bf16.mxu0 0
    %263 = vmatpush1.bf16.msra.mxu0 %v242
    %264 = vmatprep.subr.bf16.mxu0 0
    %265 = vmatpush1.bf16.msra.mxu0 %v243
    %266 = vmatprep.subr.bf16.mxu0 0
    %267 = vmatpush1.bf16.msra.mxu0 %v244
    %268 = vmatprep.subr.bf16.mxu0 0
    %269 = vmatpush1.bf16.msra.mxu0 %v245
    %270 = vmatprep.subr.bf16.mxu0 0
    %271 = vmatpush1.bf16.msra.mxu0 0
    %272 = vmatprep.subr.bf16.mxu0 0
    %273 = vmatpush1.bf16.msra.mxu0 0
    %274 = vmatprep.subr.bf16.mxu0 0
    %275 = vmatpush1.bf16.msra.mxu0 0
    %276 = vmatprep.subr.bf16.mxu0 0
    %277 = vmatpush1.bf16.msra.mxu0 0
    %278 = vmatprep.subr.bf16.mxu0 0
    %279 = vmatpush1.bf16.msra.mxu0 0
    %280 = vmatprep.subr.bf16.mxu0 0
    %281 = vmatpush1.bf16.msra.mxu0 0
    %282 = vmatprep.subr.bf16.mxu0 0
    %283 = vmatpush1.bf16.msra.mxu0 0
    %284 = vmatprep.subr.bf16.mxu0 0
    %285 = vmatpush1.bf16.msra.mxu0 0
    %286 = vmatprep.mubr.bf16.mxu0 0
    %287 = vmatmul.mubr.bf16.gmra.mrb[0].mxu0 %v182
    %v288 = vpop.f32.mrb[0].mxu0
    %v289 = vadd.f32 %v204, %v288
    %v290 = vpop.f32.mrb[0].mxu0
    %v291 = vpop.f32.mrb[0].mxu0
    %v292 = vadd.f32 %v204, %v291
    %v293 = vpop.f32.mrb[0].mxu0
    %294 = vdwg.mxu0
    %v295 = vpack.c.bf16 %v292, %v289
    %v297 = vunpack.c.l.b16 %v295
    %v298 = vunpack.c.h.b16 %v295
    %v299 = vpack.c.b16 %v297, %v297
    %v300 = vpack.c.b16 %v298, %v298
    %303 = vst [vmem:[#allocation8] sm:$0xf] %v299
    %304 = vst [vmem:[#allocation8 + $0x4] sm:$0xf] %v300
    %v305 = vmul.f32 %v289, %v289
    %v306 = vmul.f32 %v292, %v292
    %v307 = vadd.f32 %v305, %v306
    %308 = vst [vmem:[%s6] sm:$0xff] %v307
    // Predicated region
    $region34: #{_encoder_forward.1} parent=1 // pred_check
      _
    $region35: #{_encoder_forward.1} parent=1 // pred_check_branch
      %310 = sbr.rel (0) target = $region37
    $region36: #{_encoder_forward.1} parent=1 // pred_region
      %s312 = ssub.s32 128, 128
      %313 = vsyncadd [#allocation4], %s312
      %s314 = sshll.u32 [#allocation8], 4
      %s315 = int_to_ptr.vmem [resolvable:$true] %s314
      %320 = dma.vmem_to_hbm [thread:$0]  %s315, 128, %s5, [#allocation4], 64, 64, 4
    $region37: #{_encoder_forward.1} parent=1 // pred_fallthru
      _
    // Predicated region
    $region38: #{_encoder_forward.1} parent=1 // pred_check
      _
    $region39: #{_encoder_forward.1} parent=1 // pred_check_branch
      %322 = sbr.rel (0) target = $region41
    $region40: #{_encoder_forward.1} parent=1 // pred_region
      _
    $region41: #{_encoder_forward.1} parent=1 // pred_fallthru
      _
    // Predicated region
    $region42: #{_encoder_forward.1} parent=1 // pred_check
      _
    $region43: #{_encoder_forward.1} parent=1 // pred_check_branch
      %324 = sbr.rel (0) target = $region45
    $region44: #{_encoder_forward.1} parent=1 // pred_region
      %325 = dma.done [#allocation4], 128
    $region45: #{_encoder_forward.1} parent=1 // pred_fallthru
      _
    // Predicated region
    $region46: #{_encoder_forward.1} parent=1 // pred_check
      _
    $region47: #{_encoder_forward.1} parent=1 // pred_check_branch
      %327 = sbr.rel (0) target = $region49
    $region48: #{_encoder_forward.1} parent=1 // pred_region
      _
    $region49: #{_encoder_forward.1} parent=1 // pred_fallthru
      _
    %328 = vsyncpa [#allocation3], 1
    %329 = vsyncpa [#allocation6], 1
    %330 = vsyncpa [#allocation4], 1

</llo_original>
